<compile_context>
chip_gen: v7x
topology: tpu7x:2x2x1
jax: 0.10.0
libtpu: 0.0.40
codegen_flags: <defaults>
</compile_context>

<pallas_src>
import jax
import jax.numpy as jnp
from jax.experimental import pallas as pl
from jax.experimental.pallas import tpu as pltpu


def _round_up(x: int, m: int) -> int:
    return ((x + m - 1) // m) * m


def qhead_kernel(x_ref, w_ref, b_ref, o_ref):
    # One MXU pass per (TB, D) x (D, A) tile, f32 accumulation,
    # broadcast bias add, direct store of the exact output tile.
    acc = jnp.dot(x_ref[...], w_ref[...], preferred_element_type=jnp.float32)
    o_ref[...] = (acc + b_ref[...]).astype(o_ref.dtype)


def _pick_batch_tile(B: int, D: int, A: int, dtype_bytes: int = 4):
    """Pick (batch_tile, vmem_limit_bytes).

    Sizes the double-buffered x/out tiles against the actual chip's VMEM
    (bigger tiles on v5e/v6e, conservative on v7x), after reserving space for
    the resident weight/bias buffers (Pallas double-buffers them too)."""
    try:
        vmem_cap = pltpu.get_tpu_info().vmem_capacity_bytes
    except Exception:
        vmem_cap = 64 << 20  # most conservative (v7x per-TC physical)

    vmem_limit = min(vmem_cap // 2, 64 << 20)

    # Resident weight + bias: Pallas allocates two buffers even though their
    # index_map is constant, so charge 2x against the budget.
    resident = 2 * dtype_bytes * (D * A + A)
    # Leave ~25% headroom for compiler scratch / spills.
    tile_budget = max(0, (vmem_limit * 3) // 4 - resident)

    per_row = 2 * dtype_bytes * (D + A)  # double-buffered x row + out row
    tb = (tile_budget // max(per_row, 1)) // 8 * 8
    tb = max(8, min(tb, 1024))  # diminishing returns past ~1K rows

    # v7x megacore / pipelining: for big batches keep >= 2 grid steps
    # (ideally >= 4) while keeping tiles at a healthy >= 256 rows.
    if B >= 512:
        tb = min(tb, max(256, _round_up(pl.cdiv(B, 4), 8)))

    # Never larger than the (8-rounded) batch itself.
    tb = min(tb, _round_up(B, 8))
    return tb, vmem_limit


def qhead_forward(x, w_t, b, *, block_b=None):
    """x: (B, D), w_t: (D, A), b: (1, A) -> (B, A). All float32, no padding."""
    B, D = x.shape
    A = w_t.shape[1]
    dtype_bytes = jnp.dtype(x.dtype).itemsize

    tb, vmem_limit = _pick_batch_tile(B, D, A, dtype_bytes)
    if block_b is not None:
        tb = block_b

    grid = (pl.cdiv(B, tb),)

    return pl.pallas_call(
        qhead_kernel,
        out_shape=jax.ShapeDtypeStruct((B, A), x.dtype),
        grid_spec=pl.GridSpec(
            grid=grid,
            in_specs=[
                # batch-tiled activations (ragged last block handled by Pallas)
                pl.BlockSpec((tb, D), lambda i: (i, 0)),
                # weight + bias stay resident across all batch tiles
                pl.BlockSpec((D, A), lambda i: (0, 0)),
                pl.BlockSpec((1, A), lambda i: (0, 0)),
            ],
            out_specs=pl.BlockSpec((tb, A), lambda i: (i, 0)),
        ),
        compiler_params=pltpu.CompilerParams(
            # batch tiles are independent -> shard across TCs on v7x megacore
            dimension_semantics=("parallel",),
            vmem_limit_bytes=vmem_limit,
        ),
        cost_estimate=pl.CostEstimate(
            flops=2 * B * D * A,
            transcendentals=0,
            bytes_accessed=dtype_bytes * (B * D + D * A + A + B * A),
        ),
    )(x, w_t, b)


def init_qhead_params(key, input_size, num_actions, dtype=jnp.float32):
    # Mirrors init_module(self.fc, orthogonal_, constant_(0)):
    # orthogonal weight of shape (num_actions, input_size), zero bias.
    w = jax.nn.initializers.orthogonal()(key, (num_actions, input_size), dtype)
    b = jnp.zeros((1, num_actions), dtype)
    return w.T, b  # store transposed once: (input_size, num_actions)


if __name__ == "__main__":
    key = jax.random.PRNGKey(0)
    k_x, k_w, k_x2 = jax.random.split(key, 3)

    batch = 8
    input_size = 32
    num_actions = 4

    x = jax.random.normal(k_x, (batch, input_size), dtype=jnp.float32)
    w_t, b = init_qhead_params(k_w, input_size, num_actions)

    out = qhead_forward(x, w_t, b)
    jax.block_until_ready(out)

    ref = x @ w_t + b
    assert out.shape == (batch, num_actions)
    assert jnp.allclose(out, ref, atol=1e-5, rtol=1e-5)

    # Ragged-batch / multi-step-grid path: B not a multiple of the tile,
    # forcing a small tile so the grid has 2 steps with a masked last block.
    batch2 = 13
    x2 = jax.random.normal(k_x2, (batch2, input_size), dtype=jnp.float32)
    out2 = qhead_forward(x2, w_t, b, block_b=8)
    jax.block_until_ready(out2)

    ref2 = x2 @ w_t + b
    assert out2.shape == (batch2, num_actions)
    assert jnp.allclose(out2, ref2, atol=1e-5, rtol=1e-5)

    print("KERNEL_OK")
</pallas_src>

<mosaic_0001>
module attributes {stable_mosaic.version = 11 : i64} {
  func.func @qhead_kernel(%arg0: i32, %arg1: memref<8x32xf32, #tpu.memory_space<vmem>>, %arg2: memref<32x4xf32, #tpu.memory_space<vmem>>, %arg3: memref<1x4xf32, #tpu.memory_space<vmem>>, %arg4: memref<8x4xf32, #tpu.memory_space<vmem>>) attributes {dimension_semantics = [#tpu.dimension_semantics<parallel>], iteration_bounds = array<i64: 1>, scalar_prefetch = 0 : i64, scratch_operands = 0 : i64, tpu.core_type = #tpu.core_type<tc>, window_params = [{transform_indices = @transform_0, window_bounds = array<i64: 8, 32>}, {pipeline_mode = #tpu.pipeline_mode<synchronous>, transform_indices = @transform_1, window_bounds = array<i64: 32, 4>}, {pipeline_mode = #tpu.pipeline_mode<synchronous>, transform_indices = @transform_2, window_bounds = array<i64: 1, 4>}, {transform_indices = @transform_3, window_bounds = array<i64: 8, 4>}]} {
    %c0 = arith.constant 0 : index
    %c0_0 = arith.constant 0 : index
    %0 = vector.load %arg1[%c0, %c0_0] : memref<8x32xf32, #tpu.memory_space<vmem>>, vector<8x32xf32>
    %c0_1 = arith.constant 0 : index
    %c0_2 = arith.constant 0 : index
    %1 = vector.load %arg2[%c0_1, %c0_2] : memref<32x4xf32, #tpu.memory_space<vmem>>, vector<32x4xf32>
    %cst = arith.constant dense<0.000000e+00> : vector<8x4xf32>
    %2 = tpu.matmul %0, %1, %cst {dimension_numbers = #tpu.dot_dimension_numbers<[1], [0], [0], [1], [0, 0, 1, 1], [], []>} : vector<8x32xf32>, vector<32x4xf32>, vector<8x4xf32> -> vector<8x4xf32>
    %c0_3 = arith.constant 0 : index
    %c0_4 = arith.constant 0 : index
    %3 = vector.load %arg3[%c0_3, %c0_4] : memref<1x4xf32, #tpu.memory_space<vmem>>, vector<1x4xf32>
    %4 = vector.broadcast %3 : vector<1x4xf32> to vector<8x4xf32>
    %5 = arith.addf %2, %4 : vector<8x4xf32>
    %c0_5 = arith.constant 0 : index
    %c0_6 = arith.constant 0 : index
    %6 = vector.load %arg4[%c0_5, %c0_6] : memref<8x4xf32, #tpu.memory_space<vmem>>, vector<8x4xf32>
    tpu.vector_store %arg4[%c0_5, %c0_6], %5 {strides = array<i32>} : memref<8x4xf32, #tpu.memory_space<vmem>>, vector<8x4xf32>,
    return
  }
  func.func @transform_0(%arg0: i32) -> (i32, i32) {
    %c0_i32 = arith.constant 0 : i32
    %c0_i32_0 = arith.constant 0 : i32
    return %arg0, %c0_i32 : i32, i32
  }
  func.func @transform_1(%arg0: i32) -> (i32, i32) {
    %c0_i32 = arith.constant 0 : i32
    %c0_i32_0 = arith.constant 0 : i32
    %c0_i32_1 = arith.constant 0 : i32
    return %c0_i32, %c0_i32_0 : i32, i32
  }
  func.func @transform_2(%arg0: i32) -> (i32, i32) {
    %c0_i32 = arith.constant 0 : i32
    %c0_i32_0 = arith.constant 0 : i32
    %c0_i32_1 = arith.constant 0 : i32
    return %c0_i32, %c0_i32_0 : i32, i32
  }
  func.func @transform_3(%arg0: i32) -> (i32, i32) {
    %c0_i32 = arith.constant 0 : i32
    %c0_i32_0 = arith.constant 0 : i32
    return %arg0, %c0_i32 : i32, i32
  }
}

</mosaic_0001>

<llo_original>
// kernel: tpu_custom_call.1
$region0: #{tpu_custom_call.1}
  #allocation0 [shape = 'u32[]', space=smem, size = 0x4, offset = 0x4, fixed_abs, tag = 'smem constant byte address 0x4 - core index']
  #allocation1 [shape = 'u32[144,128]{1,0:T(1,128)}', space=vmem, size = 0x12000, scoped, tag = 'internal scratch']
  %s0 = inlined_call_operand.vmem [shape: f32[8,32], index: 0, kind: input, shape index: {}]
  %s1 = inlined_call_operand.vmem [shape: f32[32,4], index: 1, kind: input, shape index: {}]
  %s2 = inlined_call_operand.vmem [shape: f32[1,4], index: 2, kind: input, shape index: {}]
  %s3 = inlined_call_operand.vmem [shape: f32[8,4], index: 3, kind: output, shape index: {}]
  %s4 = sld [smem:[#allocation0]]
  $region22: #{tpu_custom_call.1} parent=0
    _
  %s6 = ssub.s32 1, %s4
  %s7 = scalar_select 0, %s6, %s4
  // Predicated region
  $region2: #{tpu_custom_call.1} parent=0 // pred_check
    _
  $region3: #{tpu_custom_call.1} parent=0 // pred_check_branch
    %9 = sbr.rel (0) target = $region5
  $region4: #{tpu_custom_call.1} parent=0 // pred_region
    _
  $region5: #{tpu_custom_call.1} parent=0 // pred_fallthru
    _
  // Predicated region
  $region6: #{tpu_custom_call.1} parent=0 // pred_check
    _
  $region7: #{tpu_custom_call.1} parent=0 // pred_check_branch
    %11 = sbr.rel (0) target = $region9
  $region8: #{tpu_custom_call.1} parent=0 // pred_region
    _
  $region9: #{tpu_custom_call.1} parent=0 // pred_fallthru
    _
  // Predicated region
  $region10: #{tpu_custom_call.1} parent=0 // pred_check
    _
  $region11: #{tpu_custom_call.1} parent=0 // pred_check_branch
    %13 = sbr.rel (0) target = $region13
  $region12: #{tpu_custom_call.1} parent=0 // pred_region
    _
  $region13: #{tpu_custom_call.1} parent=0 // pred_fallthru
    _
  %v14 = vld [vmem:[%s0] sm:$0xff]
  %v15 = vld [vmem:[%s1] sm:$0xff]
  %v16 = vld [vmem:[%s1 + $0x8] sm:$0xff]
  %v17 = vld [vmem:[%s1 + $0x10] sm:$0xff]
  %v18 = vld [vmem:[%s1 + $0x18] sm:$0xff]
  %v19 = vld [vmem:[%s2] sm:$0x1]
  %v21 = vlaneseq
  %v22 = vshrl.u32 %v21, 7
  %v23 = vsub.s32 0, %v22
  %v24 = vrot.slane %v19, %v23
  %vm26 = vcmask 261120
  %v28 = vsel %vm26, %v14, 0
  %30 = vmatprep.subr.mxu0 0.0
  %31 = vmatpush1.msra.mxu0 %v15
  %32 = vmatprep.subr.mxu0 0.0
  %33 = vmatpush1.msra.mxu0 %v16
  %34 = vmatprep.subr.mxu0 0.0
  %35 = vmatpush1.msra.mxu0 %v17
  %36 = vmatprep.subr.mxu0 0.0
  %37 = vmatpush1.msra.mxu0 %v18
  %38 = vmatprep.subr.mxu0 0.0
  %39 = vmatpush1.msra.mxu0 0.0
  %40 = vmatprep.subr.mxu0 0.0
  %41 = vmatpush1.msra.mxu0 0.0
  %42 = vmatprep.subr.mxu0 0.0
  %43 = vmatpush1.msra.mxu0 0.0
  %44 = vmatprep.subr.mxu0 0.0
  %45 = vmatpush1.msra.mxu0 0.0
  %46 = vmatprep.subr.mxu0 0.0
  %47 = vmatpush1.msra.mxu0 0.0
  %48 = vmatprep.subr.mxu0 0.0
  %49 = vmatpush1.msra.mxu0 0.0
  %50 = vmatprep.subr.mxu0 0.0
  %51 = vmatpush1.msra.mxu0 0.0
  %52 = vmatprep.subr.mxu0 0.0
  %53 = vmatpush1.msra.mxu0 0.0
  %54 = vmatprep.subr.mxu0 0.0
  %55 = vmatpush1.msra.mxu0 0.0
  %56 = vmatprep.subr.mxu0 0.0
  %57 = vmatpush1.msra.mxu0 0.0
  %58 = vmatprep.subr.mxu0 0.0
  %59 = vmatpush1.msra.mxu0 0.0
  %60 = vmatprep.subr.mxu0 0.0
  %61 = vmatpush1.msra.mxu0 0.0
  %62 = vmatprep.subr.mxu0 0.0
  %63 = vmatpush1.msra.mxu0 0.0
  %64 = vmatprep.subr.mxu0 0.0
  %65 = vmatpush1.msra.mxu0 0.0
  %66 = vmatprep.subr.mxu0 0.0
  %67 = vmatpush1.msra.mxu0 0.0
  %68 = vmatprep.subr.mxu0 0.0
  %69 = vmatpush1.msra.mxu0 0.0
  %70 = vmatprep.subr.mxu0 0.0
  %71 = vmatpush1.msra.mxu0 0.0
  %72 = vmatprep.subr.mxu0 0.0
  %73 = vmatpush1.msra.mxu0 0.0
  %74 = vmatprep.subr.mxu0 0.0
  %75 = vmatpush1.msra.mxu0 0.0
  %76 = vmatprep.subr.mxu0 0.0
  %77 = vmatpush1.msra.mxu0 0.0
  %78 = vmatprep.subr.mxu0 0.0
  %79 = vmatpush1.msra.mxu0 0.0
  %80 = vmatprep.subr.mxu0 0.0
  %81 = vmatpush1.msra.mxu0 0.0
  %82 = vmatprep.subr.mxu0 0.0
  %83 = vmatpush1.msra.mxu0 0.0
  %84 = vmatprep.subr.mxu0 0.0
  %85 = vmatpush1.msra.mxu0 0.0
  %86 = vmatprep.subr.mxu0 0.0
  %87 = vmatpush1.msra.mxu0 0.0
  %88 = vmatprep.subr.mxu0 0.0
  %89 = vmatpush1.msra.mxu0 0.0
  %90 = vmatprep.subr.mxu0 0.0
  %91 = vmatpush1.msra.mxu0 0.0
  %92 = vmatprep.subr.mxu0 0.0
  %93 = vmatpush1.msra.mxu0 0.0
  %94 = vmatprep.mubr.f32.mxu0 0.0
  %95 = vmatmul.mubr.f32.gmra.mrb[0].mxu0 %v28
  %v96 = vpop.f32.mrb[0].mxu0
  %v97 = vadd.f32 %v24, %v96
  %v98 = vpop.f32.mrb[0].mxu0
  %99 = vdwg.mxu0
  %vm100 = vcmask 31744
  %101 = vst.msk [vmem:[%s3] sm:$0xff] %vm100, %v97
  // Predicated region
  $region14: #{tpu_custom_call.1} parent=0 // pred_check
    _
  $region15: #{tpu_custom_call.1} parent=0 // pred_check_branch
    %103 = sbr.rel (0) target = $region17
  $region16: #{tpu_custom_call.1} parent=0 // pred_region
    _
  $region17: #{tpu_custom_call.1} parent=0 // pred_fallthru
    _
  // Predicated region
  $region18: #{tpu_custom_call.1} parent=0 // pred_check
    _
  $region19: #{tpu_custom_call.1} parent=0 // pred_check_branch
    %105 = sbr.rel (0) target = $region21
  $region20: #{tpu_custom_call.1} parent=0 // pred_region
    _
  $region21: #{tpu_custom_call.1} parent=0 // pred_fallthru
    _

</llo_original>
